<compile_context>
chip_gen: v7x
topology: tpu7x:2x2x1
jax: 0.10.0
libtpu: 0.0.40
codegen_flags: <defaults>
</compile_context>

<pallas_src>
import jax
import jax.numpy as jnp
from jax import lax
from jax.experimental import pallas as pl
from jax.experimental.pallas import tpu as pltpu

HIDDEN = 16
INPUT = 1
OUTPUT = 1


def rnn_linear_kernel(x_ref, h0_ref, whht_ref, wih_ref, b_ref, wlin_ref,
                      blin_ref, out_ref, hlast_ref, h_carry, hs_scratch):
    """One grid step processes one `ts`-long time tile.

    x_ref:    (seq,) f32 in SMEM (whole sequence, scalar-read per step)
    h0_ref:   (1,H)  initial hidden state
    whht_ref: (H,H)  W_hh^T
    wih_ref:  (1,H)  W_ih^T (input_size == 1)
    b_ref:    (1,H)  b_ih + b_hh (fused in wrapper)
    wlin_ref: (1,H)  W_lin
    blin_ref: (1,1)  b_lin
    out_ref:  (ts,1) per-tile output (blocked over time)
    hlast_ref:(1,H)  final hidden state (resident, written on last tile only)
    h_carry:  (1,H)  VMEM scratch carrying h across tiles
    hs_scratch:(ts,H) VMEM scratch holding the tile's hidden states
    """
    ts = out_ref.shape[0]
    tile = pl.program_id(0)

    @pl.when(tile == 0)
    def _init():
        h_carry[...] = h0_ref[...]

    whht = whht_ref[...]                       # (H,H), loop invariant
    wih = wih_ref[...]                         # (1,H)
    b = b_ref[...]                             # (1,H)
    # Identity mask used to flip h from lanes to sublanes exactly in f32
    # (VPU mul + XLU lane-reduce; avoids MXU and explicit transposes).
    rows = lax.broadcasted_iota(jnp.int32, (HIDDEN, HIDDEN), 0)
    cols = lax.broadcasted_iota(jnp.int32, (HIDDEN, HIDDEN), 1)
    eye = (rows == cols).astype(jnp.float32)   # (H,H), hoisted out of the loop
    base = tile * ts                           # global time offset of this tile

    def step(t, h):
        # Input pre-activation: independent of h -> off the serial chain.
        x_t = x_ref[base + t]                                  # scalar SMEM read
        pre = x_t * wih + b                                    # (1,H) VPU fma
        # Exact f32 matvec h @ W_hh^T on VPU/XLU (no MXU round trip):
        h_col = jnp.sum(eye * h, axis=1, keepdims=True)        # (H,1): h flipped
        rec = jnp.sum(h_col * whht, axis=0, keepdims=True)     # (1,H)
        h_new = jnp.tanh(pre + rec)                            # EUP tanh
        hs_scratch[pl.ds(t, 1), :] = h_new                     # off-chain store
        return h_new

    unroll = True if ts <= 64 else 16
    h_last = lax.fori_loop(0, ts, step, h_carry[...], unroll=unroll)
    h_carry[...] = h_last

    @pl.when(tile == pl.num_programs(0) - 1)
    def _final():
        hlast_ref[...] = h_last

    # Linear(H -> 1) batched over the whole tile: one VPU mul + lane reduce.
    out_ref[...] = (jnp.sum(hs_scratch[...] * wlin_ref[...],
                            axis=-1, keepdims=True) + blin_ref[...])


def _pick_tile(seq, cap=4096):
    """Whole sequence in one tile when it fits; otherwise largest divisor of
    seq that is a multiple of 8 and <= cap. Falls back to one tile (correct,
    just larger VMEM scratch) if no such divisor exists."""
    if seq <= cap:
        return seq
    for d in range(cap, 7, -1):
        if seq % d == 0 and d % 8 == 0:
            return d
    return seq


def net_forward(x, hidden_prev, params, *, ts=None):
    """x: (1, S, 1) float32 (batch_first), hidden_prev: (1, 1, H)."""
    W_ih, W_hh, b_ih, b_hh, W_lin, b_lin = params
    batch, seq, _ = x.shape
    assert batch == 1, "kernel implements the batch=1 case implied by hidden_prev=zeros(1,1,H)"

    x1 = x.reshape(seq).astype(jnp.float32)                 # (seq,) -> SMEM
    h0 = hidden_prev.reshape(1, HIDDEN).astype(jnp.float32)
    whh_t = W_hh.T.astype(jnp.float32)                      # (H,H) == W_hh^T
    wih = W_ih.reshape(1, HIDDEN).astype(jnp.float32)       # (1,H) == W_ih^T
    b = (b_ih + b_hh).reshape(1, HIDDEN).astype(jnp.float32)
    wlin = W_lin.reshape(1, HIDDEN).astype(jnp.float32)
    blin = b_lin.reshape(1, 1).astype(jnp.float32)

    if ts is None:
        ts = _pick_tile(seq)
    assert seq % ts == 0, "time-tile must divide the sequence length"
    num_blocks = seq // ts

    const_spec = lambda shape: pl.BlockSpec(shape, lambda i: (0, 0))
    grid_spec = pltpu.PrefetchScalarGridSpec(
        num_scalar_prefetch=0,
        grid=(num_blocks,),
        in_specs=[
            pl.BlockSpec(memory_space=pltpu.MemorySpace.SMEM),  # x, whole, SMEM
            const_spec((1, HIDDEN)),                            # h0
            const_spec((HIDDEN, HIDDEN)),                       # W_hh^T
            const_spec((1, HIDDEN)),                            # W_ih^T
            const_spec((1, HIDDEN)),                            # b_ih + b_hh
            const_spec((1, HIDDEN)),                            # W_lin
            const_spec((1, 1)),                                 # b_lin
        ],
        out_specs=(
            pl.BlockSpec((ts, OUTPUT), lambda i: (i, 0)),       # out time-tile
            const_spec((1, HIDDEN)),                            # h_last (resident)
        ),
        scratch_shapes=[
            pltpu.VMEM((1, HIDDEN), jnp.float32),               # hidden carry
            pltpu.VMEM((ts, HIDDEN), jnp.float32),              # per-step hidden states
        ],
    )

    cost = pl.CostEstimate(
        flops=seq * (2 * HIDDEN * HIDDEN + 6 * HIDDEN),
        transcendentals=seq * HIDDEN,
        bytes_accessed=4 * (seq * (INPUT + OUTPUT) + HIDDEN * HIDDEN
                            + 4 * HIDDEN + 1),
    )

    out, h_last = pl.pallas_call(
        rnn_linear_kernel,
        out_shape=(jax.ShapeDtypeStruct((seq, OUTPUT), jnp.float32),
                   jax.ShapeDtypeStruct((1, HIDDEN), jnp.float32)),
        grid_spec=grid_spec,
        compiler_params=pltpu.CompilerParams(
            dimension_semantics=("arbitrary",)),                # serial recurrence
        cost_estimate=cost,
    )(x1, h0, whh_t, wih, b, wlin, blin)

    out = out[None, :, :]                    # (1, S, 1) == out.unsqueeze(0)
    hidden = h_last.reshape(1, 1, HIDDEN)    # (num_layers, B, H)
    return out, hidden


def ref_forward(x, hidden_prev, params):
    """Pure-JAX reference reproducing the torch semantics."""
    W_ih, W_hh, b_ih, b_hh, W_lin, b_lin = params
    seq = x.shape[1]
    h = hidden_prev[0]                        # (1, H)
    hs = []
    for t in range(seq):
        x_t = x[:, t, :]                      # (1, 1)
        h = jnp.tanh(x_t @ W_ih.T + b_ih + h @ W_hh.T + b_hh)
        hs.append(h)
    hs = jnp.concatenate(hs, axis=0)          # (S, H)
    out = hs @ W_lin.T + b_lin                # (S, 1)
    return out[None], h[None]


if __name__ == "__main__":
    key = jax.random.PRNGKey(0)
    k1, k2, k3, k4, k5, k6, k7, k8 = jax.random.split(key, 8)

    # RNN params: nn.init.normal_(p, mean=0.0, std=0.001)
    W_ih = 0.001 * jax.random.normal(k1, (HIDDEN, INPUT), jnp.float32)
    W_hh = 0.001 * jax.random.normal(k2, (HIDDEN, HIDDEN), jnp.float32)
    b_ih = 0.001 * jax.random.normal(k3, (HIDDEN,), jnp.float32)
    b_hh = 0.001 * jax.random.normal(k4, (HIDDEN,), jnp.float32)
    # Linear default torch init: U(-1/sqrt(fan_in), 1/sqrt(fan_in))
    bound = 1.0 / (HIDDEN ** 0.5)
    W_lin = jax.random.uniform(k5, (OUTPUT, HIDDEN), jnp.float32, -bound, bound)
    b_lin = jax.random.uniform(k6, (OUTPUT,), jnp.float32, -bound, bound)
    params = (W_ih, W_hh, b_ih, b_hh, W_lin, b_lin)

    hidden_prev = jnp.zeros((1, 1, HIDDEN), jnp.float32)

    # Case 1: the spec's small sequence (single tile, fully unrolled).
    SEQ = 8
    x = jax.random.normal(k7, (1, SEQ, INPUT), jnp.float32)
    out, hidden = jax.block_until_ready(net_forward(x, hidden_prev, params))
    out_ref, hidden_ref = ref_forward(x, hidden_prev, params)
    assert out.shape == (1, SEQ, OUTPUT) and hidden.shape == (1, 1, HIDDEN)
    assert jnp.allclose(out, out_ref, atol=1e-5, rtol=1e-5)
    assert jnp.allclose(hidden, hidden_ref, atol=1e-5, rtol=1e-5)

    # Case 2: exercise the multi-tile grid with the hidden state carried
    # across grid iterations in VMEM scratch and h_last written on last tile.
    SEQ2, TS2 = 64, 16
    x2 = jax.random.normal(k8, (1, SEQ2, INPUT), jnp.float32)
    out2, hidden2 = jax.block_until_ready(net_forward(x2, hidden_prev, params, ts=TS2))
    out2_ref, hidden2_ref = ref_forward(x2, hidden_prev, params)
    assert out2.shape == (1, SEQ2, OUTPUT) and hidden2.shape == (1, 1, HIDDEN)
    assert jnp.allclose(out2, out2_ref, atol=1e-5, rtol=1e-5)
    assert jnp.allclose(hidden2, hidden2_ref, atol=1e-5, rtol=1e-5)

    print("KERNEL_OK")
</pallas_src>

<mosaic_0001>
module attributes {stable_mosaic.version = 11 : i64} {
  func.func @rnn_linear_kernel(%arg0: i32, %arg1: memref<8xf32, #tpu.memory_space<smem>>, %arg2: memref<1x16xf32, #tpu.memory_space<vmem>>, %arg3: memref<16x16xf32, #tpu.memory_space<vmem>>, %arg4: memref<1x16xf32, #tpu.memory_space<vmem>>, %arg5: memref<1x16xf32, #tpu.memory_space<vmem>>, %arg6: memref<1x16xf32, #tpu.memory_space<vmem>>, %arg7: memref<1x1xf32, #tpu.memory_space<vmem>>, %arg8: memref<8x1xf32, #tpu.memory_space<vmem>>, %arg9: memref<1x16xf32, #tpu.memory_space<vmem>>, %arg10: memref<1x16xf32, #tpu.memory_space<vmem>>, %arg11: memref<8x16xf32, #tpu.memory_space<vmem>>) attributes {dimension_semantics = [#tpu.dimension_semantics<arbitrary>], iteration_bounds = array<i64: 1>, scalar_prefetch = 0 : i64, scratch_operands = 2 : i64, tpu.core_type = #tpu.core_type<tc>, window_params = [{transform_indices = @transform_0, window_bounds = array<i64: 8>}, {pipeline_mode = #tpu.pipeline_mode<synchronous>, transform_indices = @transform_1, window_bounds = array<i64: 1, 16>}, {pipeline_mode = #tpu.pipeline_mode<synchronous>, transform_indices = @transform_2, window_bounds = array<i64: 16, 16>}, {pipeline_mode = #tpu.pipeline_mode<synchronous>, transform_indices = @transform_3, window_bounds = array<i64: 1, 16>}, {pipeline_mode = #tpu.pipeline_mode<synchronous>, transform_indices = @transform_4, window_bounds = array<i64: 1, 16>}, {pipeline_mode = #tpu.pipeline_mode<synchronous>, transform_indices = @transform_5, window_bounds = array<i64: 1, 16>}, {pipeline_mode = #tpu.pipeline_mode<synchronous>, transform_indices = @transform_6, window_bounds = array<i64: 1, 1>}, {transform_indices = @transform_7, window_bounds = array<i64: 8, 1>}, {pipeline_mode = #tpu.pipeline_mode<synchronous>, transform_indices = @transform_8, window_bounds = array<i64: 1, 16>}]} {
    %c0_i32 = arith.constant 0 : i32
    %0 = arith.cmpi eq, %arg0, %c0_i32 : i32
    %1 = arith.extui %0 : i1 to i32
    %c0_i32_0 = arith.constant 0 : i32
    %2 = arith.cmpi ne, %1, %c0_i32_0 : i32
    scf.if %2 {
      %c0_46 = arith.constant 0 : index
      %c0_47 = arith.constant 0 : index
      %171 = vector.load %arg2[%c0_46, %c0_47] : memref<1x16xf32, #tpu.memory_space<vmem>>, vector<1x16xf32>
      %c0_48 = arith.constant 0 : index
      %c0_49 = arith.constant 0 : index
      %172 = vector.load %arg10[%c0_48, %c0_49] : memref<1x16xf32, #tpu.memory_space<vmem>>, vector<1x16xf32>
      tpu.vector_store %arg10[%c0_48, %c0_49], %171 {strides = array<i32>} : memref<1x16xf32, #tpu.memory_space<vmem>>, vector<1x16xf32>,
    } else {
    }
    %c0 = arith.constant 0 : index
    %c0_1 = arith.constant 0 : index
    %3 = vector.load %arg3[%c0, %c0_1] : memref<16x16xf32, #tpu.memory_space<vmem>>, vector<16x16xf32>
    %c0_2 = arith.constant 0 : index
    %c0_3 = arith.constant 0 : index
    %4 = vector.load %arg4[%c0_2, %c0_3] : memref<1x16xf32, #tpu.memory_space<vmem>>, vector<1x16xf32>
    %c0_4 = arith.constant 0 : index
    %c0_5 = arith.constant 0 : index
    %5 = vector.load %arg5[%c0_4, %c0_5] : memref<1x16xf32, #tpu.memory_space<vmem>>, vector<1x16xf32>
    %6 = tpu.iota {dimensions = array<i32: 0>} : vector<16x16xi32>
    %7 = tpu.iota {dimensions = array<i32: 1>} : vector<16x16xi32>
    %8 = arith.cmpi eq, %6, %7 : vector<16x16xi32>
    %9 = arith.extui %8 : vector<16x16xi1> to vector<16x16xi32>
    %10 = arith.sitofp %9 : vector<16x16xi32> to vector<16x16xf32>
    %c8_i32 = arith.constant 8 : i32
    %11 = arith.muli %arg0, %c8_i32 : i32
    %c0_6 = arith.constant 0 : index
    %c0_7 = arith.constant 0 : index
    %12 = vector.load %arg10[%c0_6, %c0_7] : memref<1x16xf32, #tpu.memory_space<vmem>>, vector<1x16xf32>
    %c0_i32_8 = arith.constant 0 : i32
    %13 = arith.addi %11, %c0_i32_8 : i32
    %14 = arith.index_cast %13 : i32 to index
    %15 = memref.load %arg1[%14] : memref<8xf32, #tpu.memory_space<smem>>
    %16 = vector.broadcast %15 : f32 to vector<1x16xf32>
    %17 = arith.mulf %16, %4 : vector<1x16xf32>
    %18 = arith.addf %17, %5 : vector<1x16xf32>
    %19 = vector.broadcast %12 : vector<1x16xf32> to vector<16x16xf32>
    %20 = arith.mulf %10, %19 : vector<16x16xf32>
    %cst = arith.constant dense<0.000000e+00> : vector<16xf32>
    %21 = vector.multi_reduction <add>, %20, %cst [1] : vector<16x16xf32> to vector<16xf32>
    %22 = vector.shape_cast %21 : vector<16xf32> to vector<16x1xf32>
    %23 = vector.broadcast %22 : vector<16x1xf32> to vector<16x16xf32>
    %24 = arith.mulf %23, %3 : vector<16x16xf32>
    %cst_9 = arith.constant dense<0.000000e+00> : vector<16xf32>
    %25 = vector.multi_reduction <add>, %24, %cst_9 [0] : vector<16x16xf32> to vector<16xf32>
    %26 = vector.shape_cast %25 : vector<16xf32> to vector<1x16xf32>
    %27 = arith.addf %18, %26 : vector<1x16xf32>
    %28 = math.tanh %27 : vector<1x16xf32>
    %29 = arith.index_cast %c0_i32_8 : i32 to index
    %c0_10 = arith.constant 0 : index
    %30 = vector.load %arg11[%29, %c0_10] : memref<8x16xf32, #tpu.memory_space<vmem>>, vector<1x16xf32>
    tpu.vector_store %arg11[%29, %c0_10], %28 {strides = array<i32>} : memref<8x16xf32, #tpu.memory_space<vmem>>, vector<1x16xf32>,
    %c1_i32 = arith.constant 1 : i32
    %31 = arith.addi %11, %c1_i32 : i32
    %32 = arith.index_cast %31 : i32 to index
    %33 = memref.load %arg1[%32] : memref<8xf32, #tpu.memory_space<smem>>
    %34 = vector.broadcast %33 : f32 to vector<1x16xf32>
    %35 = arith.mulf %34, %4 : vector<1x16xf32>
    %36 = arith.addf %35, %5 : vector<1x16xf32>
    %37 = vector.broadcast %28 : vector<1x16xf32> to vector<16x16xf32>
    %38 = arith.mulf %10, %37 : vector<16x16xf32>
    %cst_11 = arith.constant dense<0.000000e+00> : vector<16xf32>
    %39 = vector.multi_reduction <add>, %38, %cst_11 [1] : vector<16x16xf32> to vector<16xf32>
    %40 = vector.shape_cast %39 : vector<16xf32> to vector<16x1xf32>
    %41 = vector.broadcast %40 : vector<16x1xf32> to vector<16x16xf32>
    %42 = arith.mulf %41, %3 : vector<16x16xf32>
    %cst_12 = arith.constant dense<0.000000e+00> : vector<16xf32>
    %43 = vector.multi_reduction <add>, %42, %cst_12 [0] : vector<16x16xf32> to vector<16xf32>
    %44 = vector.shape_cast %43 : vector<16xf32> to vector<1x16xf32>
    %45 = arith.addf %36, %44 : vector<1x16xf32>
    %46 = math.tanh %45 : vector<1x16xf32>
    %47 = arith.index_cast %c1_i32 : i32 to index
    %c0_13 = arith.constant 0 : index
    %48 = vector.load %arg11[%47, %c0_13] : memref<8x16xf32, #tpu.memory_space<vmem>>, vector<1x16xf32>
    tpu.vector_store %arg11[%47, %c0_13], %46 {strides = array<i32>} : memref<8x16xf32, #tpu.memory_space<vmem>>, vector<1x16xf32>,
    %c2_i32 = arith.constant 2 : i32
    %49 = arith.addi %11, %c2_i32 : i32
    %50 = arith.index_cast %49 : i32 to index
    %51 = memref.load %arg1[%50] : memref<8xf32, #tpu.memory_space<smem>>
    %52 = vector.broadcast %51 : f32 to vector<1x16xf32>
    %53 = arith.mulf %52, %4 : vector<1x16xf32>
    %54 = arith.addf %53, %5 : vector<1x16xf32>
    %55 = vector.broadcast %46 : vector<1x16xf32> to vector<16x16xf32>
    %56 = arith.mulf %10, %55 : vector<16x16xf32>
    %cst_14 = arith.constant dense<0.000000e+00> : vector<16xf32>
    %57 = vector.multi_reduction <add>, %56, %cst_14 [1] : vector<16x16xf32> to vector<16xf32>
    %58 = vector.shape_cast %57 : vector<16xf32> to vector<16x1xf32>
    %59 = vector.broadcast %58 : vector<16x1xf32> to vector<16x16xf32>
    %60 = arith.mulf %59, %3 : vector<16x16xf32>
    %cst_15 = arith.constant dense<0.000000e+00> : vector<16xf32>
    %61 = vector.multi_reduction <add>, %60, %cst_15 [0] : vector<16x16xf32> to vector<16xf32>
    %62 = vector.shape_cast %61 : vector<16xf32> to vector<1x16xf32>
    %63 = arith.addf %54, %62 : vector<1x16xf32>
    %64 = math.tanh %63 : vector<1x16xf32>
    %65 = arith.index_cast %c2_i32 : i32 to index
    %c0_16 = arith.constant 0 : index
    %66 = vector.load %arg11[%65, %c0_16] : memref<8x16xf32, #tpu.memory_space<vmem>>, vector<1x16xf32>
    tpu.vector_store %arg11[%65, %c0_16], %64 {strides = array<i32>} : memref<8x16xf32, #tpu.memory_space<vmem>>, vector<1x16xf32>,
    %c3_i32 = arith.constant 3 : i32
    %67 = arith.addi %11, %c3_i32 : i32
    %68 = arith.index_cast %67 : i32 to index
    %69 = memref.load %arg1[%68] : memref<8xf32, #tpu.memory_space<smem>>
    %70 = vector.broadcast %69 : f32 to vector<1x16xf32>
    %71 = arith.mulf %70, %4 : vector<1x16xf32>
    %72 = arith.addf %71, %5 : vector<1x16xf32>
    %73 = vector.broadcast %64 : vector<1x16xf32> to vector<16x16xf32>
    %74 = arith.mulf %10, %73 : vector<16x16xf32>
    %cst_17 = arith.constant dense<0.000000e+00> : vector<16xf32>
    %75 = vector.multi_reduction <add>, %74, %cst_17 [1] : vector<16x16xf32> to vector<16xf32>
    %76 = vector.shape_cast %75 : vector<16xf32> to vector<16x1xf32>
    %77 = vector.broadcast %76 : vector<16x1xf32> to vector<16x16xf32>
    %78 = arith.mulf %77, %3 : vector<16x16xf32>
    %cst_18 = arith.constant dense<0.000000e+00> : vector<16xf32>
    %79 = vector.multi_reduction <add>, %78, %cst_18 [0] : vector<16x16xf32> to vector<16xf32>
    %80 = vector.shape_cast %79 : vector<16xf32> to vector<1x16xf32>
    %81 = arith.addf %72, %80 : vector<1x16xf32>
    %82 = math.tanh %81 : vector<1x16xf32>
    %83 = arith.index_cast %c3_i32 : i32 to index
    %c0_19 = arith.constant 0 : index
    %84 = vector.load %arg11[%83, %c0_19] : memref<8x16xf32, #tpu.memory_space<vmem>>, vector<1x16xf32>
    tpu.vector_store %arg11[%83, %c0_19], %82 {strides = array<i32>} : memref<8x16xf32, #tpu.memory_space<vmem>>, vector<1x16xf32>,
    %c4_i32 = arith.constant 4 : i32
    %85 = arith.addi %11, %c4_i32 : i32
    %86 = arith.index_cast %85 : i32 to index
    %87 = memref.load %arg1[%86] : memref<8xf32, #tpu.memory_space<smem>>
    %88 = vector.broadcast %87 : f32 to vector<1x16xf32>
    %89 = arith.mulf %88, %4 : vector<1x16xf32>
    %90 = arith.addf %89, %5 : vector<1x16xf32>
    %91 = vector.broadcast %82 : vector<1x16xf32> to vector<16x16xf32>
    %92 = arith.mulf %10, %91 : vector<16x16xf32>
    %cst_20 = arith.constant dense<0.000000e+00> : vector<16xf32>
    %93 = vector.multi_reduction <add>, %92, %cst_20 [1] : vector<16x16xf32> to vector<16xf32>
    %94 = vector.shape_cast %93 : vector<16xf32> to vector<16x1xf32>
    %95 = vector.broadcast %94 : vector<16x1xf32> to vector<16x16xf32>
    %96 = arith.mulf %95, %3 : vector<16x16xf32>
    %cst_21 = arith.constant dense<0.000000e+00> : vector<16xf32>
    %97 = vector.multi_reduction <add>, %96, %cst_21 [0] : vector<16x16xf32> to vector<16xf32>
    %98 = vector.shape_cast %97 : vector<16xf32> to vector<1x16xf32>
    %99 = arith.addf %90, %98 : vector<1x16xf32>
    %100 = math.tanh %99 : vector<1x16xf32>
    %101 = arith.index_cast %c4_i32 : i32 to index
    %c0_22 = arith.constant 0 : index
    %102 = vector.load %arg11[%101, %c0_22] : memref<8x16xf32, #tpu.memory_space<vmem>>, vector<1x16xf32>
    tpu.vector_store %arg11[%101, %c0_22], %100 {strides = array<i32>} : memref<8x16xf32, #tpu.memory_space<vmem>>, vector<1x16xf32>,
    %c5_i32 = arith.constant 5 : i32
    %103 = arith.addi %11, %c5_i32 : i32
    %104 = arith.index_cast %103 : i32 to index
    %105 = memref.load %arg1[%104] : memref<8xf32, #tpu.memory_space<smem>>
    %106 = vector.broadcast %105 : f32 to vector<1x16xf32>
    %107 = arith.mulf %106, %4 : vector<1x16xf32>
    %108 = arith.addf %107, %5 : vector<1x16xf32>
    %109 = vector.broadcast %100 : vector<1x16xf32> to vector<16x16xf32>
    %110 = arith.mulf %10, %109 : vector<16x16xf32>
    %cst_23 = arith.constant dense<0.000000e+00> : vector<16xf32>
    %111 = vector.multi_reduction <add>, %110, %cst_23 [1] : vector<16x16xf32> to vector<16xf32>
    %112 = vector.shape_cast %111 : vector<16xf32> to vector<16x1xf32>
    %113 = vector.broadcast %112 : vector<16x1xf32> to vector<16x16xf32>
    %114 = arith.mulf %113, %3 : vector<16x16xf32>
    %cst_24 = arith.constant dense<0.000000e+00> : vector<16xf32>
    %115 = vector.multi_reduction <add>, %114, %cst_24 [0] : vector<16x16xf32> to vector<16xf32>
    %116 = vector.shape_cast %115 : vector<16xf32> to vector<1x16xf32>
    %117 = arith.addf %108, %116 : vector<1x16xf32>
    %118 = math.tanh %117 : vector<1x16xf32>
    %119 = arith.index_cast %c5_i32 : i32 to index
    %c0_25 = arith.constant 0 : index
    %120 = vector.load %arg11[%119, %c0_25] : memref<8x16xf32, #tpu.memory_space<vmem>>, vector<1x16xf32>
    tpu.vector_store %arg11[%119, %c0_25], %118 {strides = array<i32>} : memref<8x16xf32, #tpu.memory_space<vmem>>, vector<1x16xf32>,
    %c6_i32 = arith.constant 6 : i32
    %121 = arith.addi %11, %c6_i32 : i32
    %122 = arith.index_cast %121 : i32 to index
    %123 = memref.load %arg1[%122] : memref<8xf32, #tpu.memory_space<smem>>
    %124 = vector.broadcast %123 : f32 to vector<1x16xf32>
    %125 = arith.mulf %124, %4 : vector<1x16xf32>
    %126 = arith.addf %125, %5 : vector<1x16xf32>
    %127 = vector.broadcast %118 : vector<1x16xf32> to vector<16x16xf32>
    %128 = arith.mulf %10, %127 : vector<16x16xf32>
    %cst_26 = arith.constant dense<0.000000e+00> : vector<16xf32>
    %129 = vector.multi_reduction <add>, %128, %cst_26 [1] : vector<16x16xf32> to vector<16xf32>
    %130 = vector.shape_cast %129 : vector<16xf32> to vector<16x1xf32>
    %131 = vector.broadcast %130 : vector<16x1xf32> to vector<16x16xf32>
    %132 = arith.mulf %131, %3 : vector<16x16xf32>
    %cst_27 = arith.constant dense<0.000000e+00> : vector<16xf32>
    %133 = vector.multi_reduction <add>, %132, %cst_27 [0] : vector<16x16xf32> to vector<16xf32>
    %134 = vector.shape_cast %133 : vector<16xf32> to vector<1x16xf32>
    %135 = arith.addf %126, %134 : vector<1x16xf32>
    %136 = math.tanh %135 : vector<1x16xf32>
    %137 = arith.index_cast %c6_i32 : i32 to index
    %c0_28 = arith.constant 0 : index
    %138 = vector.load %arg11[%137, %c0_28] : memref<8x16xf32, #tpu.memory_space<vmem>>, vector<1x16xf32>
    tpu.vector_store %arg11[%137, %c0_28], %136 {strides = array<i32>} : memref<8x16xf32, #tpu.memory_space<vmem>>, vector<1x16xf32>,
    %c7_i32 = arith.constant 7 : i32
    %139 = arith.addi %11, %c7_i32 : i32
    %140 = arith.index_cast %139 : i32 to index
    %141 = memref.load %arg1[%140] : memref<8xf32, #tpu.memory_space<smem>>
    %142 = vector.broadcast %141 : f32 to vector<1x16xf32>
    %143 = arith.mulf %142, %4 : vector<1x16xf32>
    %144 = arith.addf %143, %5 : vector<1x16xf32>
    %145 = vector.broadcast %136 : vector<1x16xf32> to vector<16x16xf32>
    %146 = arith.mulf %10, %145 : vector<16x16xf32>
    %cst_29 = arith.constant dense<0.000000e+00> : vector<16xf32>
    %147 = vector.multi_reduction <add>, %146, %cst_29 [1] : vector<16x16xf32> to vector<16xf32>
    %148 = vector.shape_cast %147 : vector<16xf32> to vector<16x1xf32>
    %149 = vector.broadcast %148 : vector<16x1xf32> to vector<16x16xf32>
    %150 = arith.mulf %149, %3 : vector<16x16xf32>
    %cst_30 = arith.constant dense<0.000000e+00> : vector<16xf32>
    %151 = vector.multi_reduction <add>, %150, %cst_30 [0] : vector<16x16xf32> to vector<16xf32>
    %152 = vector.shape_cast %151 : vector<16xf32> to vector<1x16xf32>
    %153 = arith.addf %144, %152 : vector<1x16xf32>
    %154 = math.tanh %153 : vector<1x16xf32>
    %155 = arith.index_cast %c7_i32 : i32 to index
    %c0_31 = arith.constant 0 : index
    %156 = vector.load %arg11[%155, %c0_31] : memref<8x16xf32, #tpu.memory_space<vmem>>, vector<1x16xf32>
    tpu.vector_store %arg11[%155, %c0_31], %154 {strides = array<i32>} : memref<8x16xf32, #tpu.memory_space<vmem>>, vector<1x16xf32>,
    %c8_i32_32 = arith.constant 8 : i32
    %c0_33 = arith.constant 0 : index
    %c0_34 = arith.constant 0 : index
    %157 = vector.load %arg10[%c0_33, %c0_34] : memref<1x16xf32, #tpu.memory_space<vmem>>, vector<1x16xf32>
    tpu.vector_store %arg10[%c0_33, %c0_34], %154 {strides = array<i32>} : memref<1x16xf32, #tpu.memory_space<vmem>>, vector<1x16xf32>,
    %c0_i32_35 = arith.constant 0 : i32
    %158 = arith.cmpi eq, %arg0, %c0_i32_35 : i32
    %159 = arith.extui %158 : i1 to i32
    %c0_i32_36 = arith.constant 0 : i32
    %160 = arith.cmpi ne, %159, %c0_i32_36 : i32
    scf.if %160 {
      %c0_46 = arith.constant 0 : index
      %c0_47 = arith.constant 0 : index
      %171 = vector.load %arg9[%c0_46, %c0_47] : memref<1x16xf32, #tpu.memory_space<vmem>>, vector<1x16xf32>
      tpu.vector_store %arg9[%c0_46, %c0_47], %154 {strides = array<i32>} : memref<1x16xf32, #tpu.memory_space<vmem>>, vector<1x16xf32>,
    } else {
    }
    %c0_37 = arith.constant 0 : index
    %c0_38 = arith.constant 0 : index
    %161 = vector.load %arg11[%c0_37, %c0_38] : memref<8x16xf32, #tpu.memory_space<vmem>>, vector<8x16xf32>
    %c0_39 = arith.constant 0 : index
    %c0_40 = arith.constant 0 : index
    %162 = vector.load %arg6[%c0_39, %c0_40] : memref<1x16xf32, #tpu.memory_space<vmem>>, vector<1x16xf32>
    %163 = vector.broadcast %162 : vector<1x16xf32> to vector<8x16xf32>
    %164 = arith.mulf %161, %163 : vector<8x16xf32>
    %cst_41 = arith.constant dense<0.000000e+00> : vector<8xf32>
    %165 = vector.multi_reduction <add>, %164, %cst_41 [1] : vector<8x16xf32> to vector<8xf32>
    %166 = vector.shape_cast %165 : vector<8xf32> to vector<8x1xf32>
    %c0_42 = arith.constant 0 : index
    %c0_43 = arith.constant 0 : index
    %167 = vector.load %arg7[%c0_42, %c0_43] : memref<1x1xf32, #tpu.memory_space<vmem>>, vector<1x1xf32>
    %168 = vector.broadcast %167 : vector<1x1xf32> to vector<8x1xf32>
    %169 = arith.addf %166, %168 : vector<8x1xf32>
    %c0_44 = arith.constant 0 : index
    %c0_45 = arith.constant 0 : index
    %170 = vector.load %arg8[%c0_44, %c0_45] : memref<8x1xf32, #tpu.memory_space<vmem>>, vector<8x1xf32>
    tpu.vector_store %arg8[%c0_44, %c0_45], %169 {strides = array<i32>} : memref<8x1xf32, #tpu.memory_space<vmem>>, vector<8x1xf32>,
    return
  }
  func.func @transform_0(%arg0: i32) -> i32 {
    %c0_i32 = arith.constant 0 : i32
    %c0_i32_0 = arith.constant 0 : i32
    return %c0_i32 : i32
  }
  func.func @transform_1(%arg0: i32) -> (i32, i32) {
    %c0_i32 = arith.constant 0 : i32
    %c0_i32_0 = arith.constant 0 : i32
    %c0_i32_1 = arith.constant 0 : i32
    return %c0_i32, %c0_i32_0 : i32, i32
  }
  func.func @transform_2(%arg0: i32) -> (i32, i32) {
    %c0_i32 = arith.constant 0 : i32
    %c0_i32_0 = arith.constant 0 : i32
    %c0_i32_1 = arith.constant 0 : i32
    return %c0_i32, %c0_i32_0 : i32, i32
  }
  func.func @transform_3(%arg0: i32) -> (i32, i32) {
    %c0_i32 = arith.constant 0 : i32
    %c0_i32_0 = arith.constant 0 : i32
    %c0_i32_1 = arith.constant 0 : i32
    return %c0_i32, %c0_i32_0 : i32, i32
  }
  func.func @transform_4(%arg0: i32) -> (i32, i32) {
    %c0_i32 = arith.constant 0 : i32
    %c0_i32_0 = arith.constant 0 : i32
    %c0_i32_1 = arith.constant 0 : i32
    return %c0_i32, %c0_i32_0 : i32, i32
  }
  func.func @transform_5(%arg0: i32) -> (i32, i32) {
    %c0_i32 = arith.constant 0 : i32
    %c0_i32_0 = arith.constant 0 : i32
    %c0_i32_1 = arith.constant 0 : i32
    return %c0_i32, %c0_i32_0 : i32, i32
  }
  func.func @transform_6(%arg0: i32) -> (i32, i32) {
    %c0_i32 = arith.constant 0 : i32
    %c0_i32_0 = arith.constant 0 : i32
    %c0_i32_1 = arith.constant 0 : i32
    return %c0_i32, %c0_i32_0 : i32, i32
  }
  func.func @transform_7(%arg0: i32) -> (i32, i32) {
    %c0_i32 = arith.constant 0 : i32
    %c0_i32_0 = arith.constant 0 : i32
    return %arg0, %c0_i32 : i32, i32
  }
  func.func @transform_8(%arg0: i32) -> (i32, i32) {
    %c0_i32 = arith.constant 0 : i32
    %c0_i32_0 = arith.constant 0 : i32
    %c0_i32_1 = arith.constant 0 : i32
    return %c0_i32, %c0_i32_0 : i32, i32
  }
}

</mosaic_0001>

<llo_original>
// kernel: tpu_custom_call.1
$region0: #{tpu_custom_call.1}
  #allocation0 [shape = 'u32[]', space=smem, size = 0x4, offset = 0x4, fixed_abs, tag = 'smem constant byte address 0x4 - core index']
  #allocation1 [shape = 'u32[144,128]{1,0:T(1,128)}', space=vmem, size = 0x12000, scoped, tag = 'internal scratch']
  #allocation2 [shape = 'f32[1,16]{1,0:T(1,128)}', space=vmem, size = 0x200, scoped, tag = 'scratch operand']
  #allocation3 [shape = 'f32[8,16]{1,0:T(8,128)}', space=vmem, size = 0x1000, scoped, tag = 'scratch operand']
  #allocation4 [shape = 'f32[1,1]{1,0:T(1,128)S(1)}', space=vmem, size = 0x200, scoped, tag = 'scoped memory for tpu_custom_call.1']
  %s0 = inlined_call_operand.vmem [shape: f32[8], index: 0, kind: input, shape index: {}]
  %s1 = inlined_call_operand.vmem [shape: f32[1,16], index: 1, kind: input, shape index: {}]
  %s2 = inlined_call_operand.hbm [shape: f32[16,16], index: 2, kind: input, shape index: {}]
  %s3 = inlined_call_operand.vmem [shape: f32[1,16], index: 3, kind: input, shape index: {}]
  %s4 = inlined_call_operand.vmem [shape: f32[1,16], index: 4, kind: input, shape index: {}]
  %s5 = inlined_call_operand.vmem [shape: f32[1,16], index: 5, kind: input, shape index: {}]
  %s6 = inlined_call_operand.<no memory space> [shape: f32[1,1], index: 6, kind: input, shape index: {}]
  %s7 = inlined_call_operand.vmem [shape: f32[8,1], index: 7, kind: output, shape index: {0}]
  %s8 = inlined_call_operand.hbm [shape: f32[1,16], index: 8, kind: output, shape index: {1}]
  %9 = xla_tuple %s7, %s8
  %s10 = sld [smem:[#allocation0]]
  $region62: #{tpu_custom_call.1} parent=0
    _
  %s12 = ssub.s32 1, %s10
  %s13 = scalar_select 0, %s12, %s10
  %v14 = vstv %s6
  %15 = vst [vmem:[#allocation4] sm:$0x1] %v14
  $region1: #{tpu_custom_call.1} parent=0
    #allocation5 [shape = 'u8[512]{0}', space=smem, size = 0x200, scoped, tag = 'input window, operand 0, single buffered']
    #allocation6 [shape = 's32[1]{0}', space=sflag, size = 0x4, scoped, tag = 'scoped memory for tpu_custom_call.1']
    #allocation7 [shape = 's32[1]{0}', space=sflag, size = 0x4, scoped, tag = 'scoped memory for tpu_custom_call.1']
    #allocation8 [shape = 's32[1]{0}', space=sflag, size = 0x4, scoped, tag = 'scoped memory for tpu_custom_call.1']
    #allocation9 [shape = 'u8[8192]{0}', space=vmem, size = 0x2000, scoped, tag = 'input window, operand 2, single buffered']
    #allocation10 [shape = 'u8[512]{0}', space=vmem, size = 0x400, scoped, tag = 'output window, operand 1, single buffered']
    %16 = vsyncpa [#allocation8], 0
    %17 = vsyncpa [#allocation6], 0
    %18 = vsyncpa [#allocation7], 0
    // Predicated region
    $region2: #{tpu_custom_call.1} parent=1 // pred_check
      _
    $region3: #{tpu_custom_call.1} parent=1 // pred_check_branch
      %20 = sbr.rel (0) target = $region5
    $region4: #{tpu_custom_call.1} parent=1 // pred_region
      %s22 = ssub.s32 16, 16
      %23 = vsyncadd [#allocation8], %s22
      %s25 = sshll.u32 %s0, 4
      %s26 = int_to_ptr.vmem [resolvable:$true] %s25
      %28 = dma.vmem_to_smem %s26, 16, [#allocation5], [#allocation8]
    $region5: #{tpu_custom_call.1} parent=1 // pred_fallthru
      _
    // Predicated region
    $region6: #{tpu_custom_call.1} parent=1 // pred_check
      _
    $region7: #{tpu_custom_call.1} parent=1 // pred_check_branch
      %30 = sbr.rel (0) target = $region9
    $region8: #{tpu_custom_call.1} parent=1 // pred_region
      _
    $region9: #{tpu_custom_call.1} parent=1 // pred_fallthru
      _
    // Predicated region
    $region10: #{tpu_custom_call.1} parent=1 // pred_check
      _
    $region11: #{tpu_custom_call.1} parent=1 // pred_check_branch
      %32 = sbr.rel (0) target = $region13
    $region12: #{tpu_custom_call.1} parent=1 // pred_region
      %s34 = ssub.s32 256, 256
      %35 = vsyncadd [#allocation6], %s34
      %s36 = sshll.u32 [#allocation9], 4
      %s37 = int_to_ptr.vmem [resolvable:$true] %s36
      %42 = dma.hbm_to_vmem [thread:$0]  %s2, 256, %s37, [#allocation6], 128, 128, 8
    $region13: #{tpu_custom_call.1} parent=1 // pred_fallthru
      _
    // Predicated region
    $region14: #{tpu_custom_call.1} parent=1 // pred_check
      _
    $region15: #{tpu_custom_call.1} parent=1 // pred_check_branch
      %44 = sbr.rel (0) target = $region17
    $region16: #{tpu_custom_call.1} parent=1 // pred_region
      _
    $region17: #{tpu_custom_call.1} parent=1 // pred_fallthru
      _
    // Predicated region
    $region18: #{tpu_custom_call.1} parent=1 // pred_check
      _
    $region19: #{tpu_custom_call.1} parent=1 // pred_check_branch
      %46 = sbr.rel (0) target = $region21
    $region20: #{tpu_custom_call.1} parent=1 // pred_region
      _
    $region21: #{tpu_custom_call.1} parent=1 // pred_fallthru
      _
    // Predicated region
    $region22: #{tpu_custom_call.1} parent=1 // pred_check
      _
    $region23: #{tpu_custom_call.1} parent=1 // pred_check_branch
      %48 = sbr.rel (0) target = $region25
    $region24: #{tpu_custom_call.1} parent=1 // pred_region
      _
    $region25: #{tpu_custom_call.1} parent=1 // pred_fallthru
      _
    // Predicated region
    $region26: #{tpu_custom_call.1} parent=1 // pred_check
      _
    $region27: #{tpu_custom_call.1} parent=1 // pred_check_branch
      %50 = sbr.rel (0) target = $region29
    $region28: #{tpu_custom_call.1} parent=1 // pred_region
      _
    $region29: #{tpu_custom_call.1} parent=1 // pred_fallthru
      _
    // Predicated region
    $region30: #{tpu_custom_call.1} parent=1 // pred_check
      _
    $region31: #{tpu_custom_call.1} parent=1 // pred_check_branch
      %52 = sbr.rel (0) target = $region33
    $region32: #{tpu_custom_call.1} parent=1 // pred_region
      %53 = dma.done [#allocation8], 16
    $region33: #{tpu_custom_call.1} parent=1 // pred_fallthru
      _
    // Predicated region
    $region34: #{tpu_custom_call.1} parent=1 // pred_check
      _
    $region35: #{tpu_custom_call.1} parent=1 // pred_check_branch
      %55 = sbr.rel (0) target = $region37
    $region36: #{tpu_custom_call.1} parent=1 // pred_region
      %56 = dma.done [#allocation6], 256
    $region37: #{tpu_custom_call.1} parent=1 // pred_fallthru
      _
    %57 = sfence
    %p58 = scmp.eq.s32.totalorder 0, 0
    // Predicated region
    $region38: #{tpu_custom_call.1} parent=1 // pred_check
      %p59 = pneg %p58
    $region39: #{tpu_custom_call.1} parent=1 // pred_check_branch
      %61 = sbr.rel (%p59) target = $region41
    $region40: #{tpu_custom_call.1} parent=1 // pred_region
      %v62 = vld [vmem:[%s1] sm:$0x1]
      %vm63 = vcmask 122880
      %64 = vst.msk [vmem:[#allocation2] sm:$0x1] %vm63, %v62
    $region41: #{tpu_custom_call.1} parent=1 // pred_fallthru
      _
    %v65 = vld [vmem:[#allocation9] sm:$0xff]
    %v66 = vld [vmem:[#allocation9 + $0x8] sm:$0xff]
    %v67 = vld [vmem:[%s3] sm:$0x1]
    %v68 = vld [vmem:[%s4] sm:$0x1]
    %v69 = vlaneseq
    %v70 = vshrl.u32 %v69, 7
    %v71 = vadd.s32 %v70, 8
    %v72 = vlaneseq
    %v73 = vand.u32 %v72, 127
    %vm74 = vcmp.eq.s32.totalorder %v70, %v73
    %vm75 = vcmp.eq.s32.totalorder %v71, %v73
    %v76 = vsel %vm74, 1, 0
    %v77 = vsel %vm75, 1, 0
    %v78 = vcvt.s32.f32 %v76
    %v79 = vcvt.s32.f32 %v77
    %s80 = smul.u32 0, 8
    %v81 = vld [vmem:[#allocation2] sm:$0x1]
    %s82 = sld [smem:[#allocation5 + %s80]]
    %v83 = vstv %s82
    %v84 = vmul.f32 %v83, %v67
    %v85 = vadd.f32 %v84, %v68
    %v87 = vlaneseq
    %v88 = vshrl.u32 %v87, 7
    %v89 = vsub.s32 0, %v88
    %v90 = vrot.slane %v81, %v89
    %v92 = vmul.f32 %v78, %v90
    %v93 = vmul.f32 %v79, %v90
    %vm94 = vcmask 130048
    %v95 = vsel %vm94, %v92, 0.0
    %96 = vadd.xlane.f32.xlu0 %v95
    %v97 = vpop.xlane.xlu0 %96
    %v98 = vsel %vm94, %v93, 0.0
    %99 = vadd.xlane.f32.xlu0 %v98
    %v100 = vpop.xlane.xlu0 %99
    %v101 = vmul.f32 %v97, %v65
    %v102 = vmul.f32 %v100, %v66
    %v103 = vsel %vm94, %v101, 0.0
    %v104 = vsel %vm94, %v102, 0.0
    %v105 = vadd.f32 %v103, %v104
    %v106 = vrot.slane %v105, 4
    %v107 = vadd.f32 %v105, %v106
    %v108 = vrot.slane %v107, 2
    %v109 = vadd.f32 %v107, %v108
    %v110 = vrot.slane %v109, 1
    %v111 = vadd.f32 %v109, %v110
    %v112 = vadd.f32 %v85, %v111
    %v113 = vtanh.pop %v112
    %vm114 = vcmask 122880
    %115 = vst.msk [vmem:[#allocation3] sm:$0x1] %vm114, %v113
    %s116 = sadd.s32 %s80, 1
    %s117 = sld [smem:[#allocation5 + %s116]]
    %v118 = vstv %s117
    %v119 = vmul.f32 %v118, %v67
    %v120 = vadd.f32 %v119, %v68
    %v122 = vlaneseq
    %v123 = vshrl.u32 %v122, 7
    %v124 = vsub.s32 0, %v123
    %v125 = vrot.slane %v113, %v124
    %v127 = vmul.f32 %v78, %v125
    %v128 = vmul.f32 %v79, %v125
    %v129 = vsel %vm94, %v127, 0.0
    %130 = vadd.xlane.f32.xlu0 %v129
    %v131 = vpop.xlane.xlu0 %130
    %v132 = vsel %vm94, %v128, 0.0
    %133 = vadd.xlane.f32.xlu0 %v132
    %v134 = vpop.xlane.xlu0 %133
    %v135 = vmul.f32 %v131, %v65
    %v136 = vmul.f32 %v134, %v66
    %v137 = vsel %vm94, %v135, 0.0
    %v138 = vsel %vm94, %v136, 0.0
    %v139 = vadd.f32 %v137, %v138
    %v140 = vrot.slane %v139, 4
    %v141 = vadd.f32 %v139, %v140
    %v142 = vrot.slane %v141, 2
    %v143 = vadd.f32 %v141, %v142
    %v144 = vrot.slane %v143, 1
    %v145 = vadd.f32 %v143, %v144
    %v146 = vadd.f32 %v120, %v145
    %v147 = vtanh.pop %v146
    %148 = vst.msk [vmem:[#allocation3 + $0x1] sm:$0x1] %vm114, %v147
    %s149 = sadd.s32 %s80, 2
    %s150 = sld [smem:[#allocation5 + %s149]]
    %v151 = vstv %s150
    %v152 = vmul.f32 %v151, %v67
    %v153 = vadd.f32 %v152, %v68
    %v155 = vlaneseq
    %v156 = vshrl.u32 %v155, 7
    %v157 = vsub.s32 0, %v156
    %v158 = vrot.slane %v147, %v157
    %v160 = vmul.f32 %v78, %v158
    %v161 = vmul.f32 %v79, %v158
    %v162 = vsel %vm94, %v160, 0.0
    %163 = vadd.xlane.f32.xlu0 %v162
    %v164 = vpop.xlane.xlu0 %163
    %v165 = vsel %vm94, %v161, 0.0
    %166 = vadd.xlane.f32.xlu0 %v165
    %v167 = vpop.xlane.xlu0 %166
    %v168 = vmul.f32 %v164, %v65
    %v169 = vmul.f32 %v167, %v66
    %v170 = vsel %vm94, %v168, 0.0
    %v171 = vsel %vm94, %v169, 0.0
    %v172 = vadd.f32 %v170, %v171
    %v173 = vrot.slane %v172, 4
    %v174 = vadd.f32 %v172, %v173
    %v175 = vrot.slane %v174, 2
    %v176 = vadd.f32 %v174, %v175
    %v177 = vrot.slane %v176, 1
    %v178 = vadd.f32 %v176, %v177
    %v179 = vadd.f32 %v153, %v178
    %v180 = vtanh.pop %v179
    %181 = vst.msk [vmem:[#allocation3 + $0x2] sm:$0x1] %vm114, %v180
    %s182 = sadd.s32 %s80, 3
    %s183 = sld [smem:[#allocation5 + %s182]]
    %v184 = vstv %s183
    %v185 = vmul.f32 %v184, %v67
    %v186 = vadd.f32 %v185, %v68
    %v188 = vlaneseq
    %v189 = vshrl.u32 %v188, 7
    %v190 = vsub.s32 0, %v189
    %v191 = vrot.slane %v180, %v190
    %v193 = vmul.f32 %v78, %v191
    %v194 = vmul.f32 %v79, %v191
    %v195 = vsel %vm94, %v193, 0.0
    %196 = vadd.xlane.f32.xlu0 %v195
    %v197 = vpop.xlane.xlu0 %196
    %v198 = vsel %vm94, %v194, 0.0
    %199 = vadd.xlane.f32.xlu0 %v198
    %v200 = vpop.xlane.xlu0 %199
    %v201 = vmul.f32 %v197, %v65
    %v202 = vmul.f32 %v200, %v66
    %v203 = vsel %vm94, %v201, 0.0
    %v204 = vsel %vm94, %v202, 0.0
    %v205 = vadd.f32 %v203, %v204
    %v206 = vrot.slane %v205, 4
    %v207 = vadd.f32 %v205, %v206
    %v208 = vrot.slane %v207, 2
    %v209 = vadd.f32 %v207, %v208
    %v210 = vrot.slane %v209, 1
    %v211 = vadd.f32 %v209, %v210
    %v212 = vadd.f32 %v186, %v211
    %v213 = vtanh.pop %v212
    %214 = vst.msk [vmem:[#allocation3 + $0x3] sm:$0x1] %vm114, %v213
    %s215 = sadd.s32 %s80, 4
    %s216 = sld [smem:[#allocation5 + %s215]]
    %v217 = vstv %s216
    %v218 = vmul.f32 %v217, %v67
    %v219 = vadd.f32 %v218, %v68
    %v221 = vlaneseq
    %v222 = vshrl.u32 %v221, 7
    %v223 = vsub.s32 0, %v222
    %v224 = vrot.slane %v213, %v223
    %v226 = vmul.f32 %v78, %v224
    %v227 = vmul.f32 %v79, %v224
    %v228 = vsel %vm94, %v226, 0.0
    %229 = vadd.xlane.f32.xlu0 %v228
    %v230 = vpop.xlane.xlu0 %229
    %v231 = vsel %vm94, %v227, 0.0
    %232 = vadd.xlane.f32.xlu0 %v231
    %v233 = vpop.xlane.xlu0 %232
    %v234 = vmul.f32 %v230, %v65
    %v235 = vmul.f32 %v233, %v66
    %v236 = vsel %vm94, %v234, 0.0
    %v237 = vsel %vm94, %v235, 0.0
    %v238 = vadd.f32 %v236, %v237
    %v239 = vrot.slane %v238, 4
    %v240 = vadd.f32 %v238, %v239
    %v241 = vrot.slane %v240, 2
    %v242 = vadd.f32 %v240, %v241
    %v243 = vrot.slane %v242, 1
    %v244 = vadd.f32 %v242, %v243
    %v245 = vadd.f32 %v219, %v244
    %v246 = vtanh.pop %v245
    %247 = vst.msk [vmem:[#allocation3 + $0x4] sm:$0x1] %vm114, %v246
    %s248 = sadd.s32 %s80, 5
    %s249 = sld [smem:[#allocation5 + %s248]]
    %v250 = vstv %s249
    %v251 = vmul.f32 %v250, %v67
    %v252 = vadd.f32 %v251, %v68
    %v254 = vlaneseq
    %v255 = vshrl.u32 %v254, 7
    %v256 = vsub.s32 0, %v255
    %v257 = vrot.slane %v246, %v256
    %v259 = vmul.f32 %v78, %v257
    %v260 = vmul.f32 %v79, %v257
    %v261 = vsel %vm94, %v259, 0.0
    %262 = vadd.xlane.f32.xlu0 %v261
    %v263 = vpop.xlane.xlu0 %262
    %v264 = vsel %vm94, %v260, 0.0
    %265 = vadd.xlane.f32.xlu0 %v264
    %v266 = vpop.xlane.xlu0 %265
    %v267 = vmul.f32 %v263, %v65
    %v268 = vmul.f32 %v266, %v66
    %v269 = vsel %vm94, %v267, 0.0
    %v270 = vsel %vm94, %v268, 0.0
    %v271 = vadd.f32 %v269, %v270
    %v272 = vrot.slane %v271, 4
    %v273 = vadd.f32 %v271, %v272
    %v274 = vrot.slane %v273, 2
    %v275 = vadd.f32 %v273, %v274
    %v276 = vrot.slane %v275, 1
    %v277 = vadd.f32 %v275, %v276
    %v278 = vadd.f32 %v252, %v277
    %v279 = vtanh.pop %v278
    %280 = vst.msk [vmem:[#allocation3 + $0x5] sm:$0x1] %vm114, %v279
    %s281 = sadd.s32 %s80, 6
    %s282 = sld [smem:[#allocation5 + %s281]]
    %v283 = vstv %s282
    %v284 = vmul.f32 %v283, %v67
    %v285 = vadd.f32 %v284, %v68
    %v287 = vlaneseq
    %v288 = vshrl.u32 %v287, 7
    %v289 = vsub.s32 0, %v288
    %v290 = vrot.slane %v279, %v289
    %v292 = vmul.f32 %v78, %v290
    %v293 = vmul.f32 %v79, %v290
    %v294 = vsel %vm94, %v292, 0.0
    %295 = vadd.xlane.f32.xlu0 %v294
    %v296 = vpop.xlane.xlu0 %295
    %v297 = vsel %vm94, %v293, 0.0
    %298 = vadd.xlane.f32.xlu0 %v297
    %v299 = vpop.xlane.xlu0 %298
    %v300 = vmul.f32 %v296, %v65
    %v301 = vmul.f32 %v299, %v66
    %v302 = vsel %vm94, %v300, 0.0
    %v303 = vsel %vm94, %v301, 0.0
    %v304 = vadd.f32 %v302, %v303
    %v305 = vrot.slane %v304, 4
    %v306 = vadd.f32 %v304, %v305
    %v307 = vrot.slane %v306, 2
    %v308 = vadd.f32 %v306, %v307
    %v309 = vrot.slane %v308, 1
    %v310 = vadd.f32 %v308, %v309
    %v311 = vadd.f32 %v285, %v310
    %v312 = vtanh.pop %v311
    %313 = vst.msk [vmem:[#allocation3 + $0x6] sm:$0x1] %vm114, %v312
    %s314 = sadd.s32 %s80, 7
    %s315 = sld [smem:[#allocation5 + %s314]]
    %v316 = vstv %s315
    %v317 = vmul.f32 %v316, %v67
    %v318 = vadd.f32 %v317, %v68
    %v320 = vlaneseq
    %v321 = vshrl.u32 %v320, 7
    %v322 = vsub.s32 0, %v321
    %v323 = vrot.slane %v312, %v322
    %v325 = vmul.f32 %v78, %v323
    %v326 = vmul.f32 %v79, %v323
    %v327 = vsel %vm94, %v325, 0.0
    %328 = vadd.xlane.f32.xlu0 %v327
    %v329 = vpop.xlane.xlu0 %328
    %v330 = vsel %vm94, %v326, 0.0
    %331 = vadd.xlane.f32.xlu0 %v330
    %v332 = vpop.xlane.xlu0 %331
    %v333 = vmul.f32 %v329, %v65
    %v334 = vmul.f32 %v332, %v66
    %v335 = vsel %vm94, %v333, 0.0
    %v336 = vsel %vm94, %v334, 0.0
    %v337 = vadd.f32 %v335, %v336
    %v338 = vrot.slane %v337, 4
    %v339 = vadd.f32 %v337, %v338
    %v340 = vrot.slane %v339, 2
    %v341 = vadd.f32 %v339, %v340
    %v342 = vrot.slane %v341, 1
    %v343 = vadd.f32 %v341, %v342
    %v344 = vadd.f32 %v318, %v343
    %v345 = vtanh.pop %v344
    %346 = vst.msk [vmem:[#allocation3 + $0x7] sm:$0x1] %vm114, %v345
    %347 = vst.msk [vmem:[#allocation2] sm:$0x1] %vm114, %v345
    // Predicated region
    $region42: #{tpu_custom_call.1} parent=1 // pred_check
      %p348 = pneg %p58
    $region43: #{tpu_custom_call.1} parent=1 // pred_check_branch
      %350 = sbr.rel (%p348) target = $region45
    $region44: #{tpu_custom_call.1} parent=1 // pred_region
      %351 = vst.msk [vmem:[#allocation10] sm:$0x1] %vm114, %v345
    $region45: #{tpu_custom_call.1} parent=1 // pred_fallthru
      _
    %v352 = vld [vmem:[#allocation3] sm:$0xff]
    %v353 = vld [vmem:[%s5] sm:$0x1]
    %v355 = vlaneseq
    %v356 = vshrl.u32 %v355, 7
    %v357 = vsub.s32 0, %v356
    %v358 = vrot.slane %v353, %v357
    %v360 = vmul.f32 %v352, %v358
    %v361 = vsel %vm94, %v360, 0.0
    %362 = vadd.xlane.f32.xlu0 %v361
    %v363 = vpop.xlane.xlu0 %362
    %v364 = vld [vmem:[#allocation4] sm:$0x1]
    %v366 = vlaneseq
    %v367 = vshrl.u32 %v366, 7
    %v368 = vsub.s32 0, %v367
    %v369 = vrot.slane %v364, %v368
    %v371 = vadd.f32 %v363, %v369
    %vm372 = vcmask 7168
    %373 = vst.msk [vmem:[%s7] sm:$0xff] %vm372, %v371
    // Predicated region
    $region46: #{tpu_custom_call.1} parent=1 // pred_check
      _
    $region47: #{tpu_custom_call.1} parent=1 // pred_check_branch
      %375 = sbr.rel (0) target = $region49
    $region48: #{tpu_custom_call.1} parent=1 // pred_region
      _
    $region49: #{tpu_custom_call.1} parent=1 // pred_fallthru
      _
    // Predicated region
    $region50: #{tpu_custom_call.1} parent=1 // pred_check
      _
    $region51: #{tpu_custom_call.1} parent=1 // pred_check_branch
      %377 = sbr.rel (0) target = $region53
    $region52: #{tpu_custom_call.1} parent=1 // pred_region
      %s379 = ssub.s32 16, 16
      %380 = vsyncadd [#allocation7], %s379
      %s382 = sshll.u32 [#allocation10], 4
      %s383 = int_to_ptr.vmem [resolvable:$true] %s382
      %385 = dma.vmem_to_hbm [thread:$0]  %s383, 16, %s8, [#allocation7]
    $region53: #{tpu_custom_call.1} parent=1 // pred_fallthru
      _
    // Predicated region
    $region54: #{tpu_custom_call.1} parent=1 // pred_check
      _
    $region55: #{tpu_custom_call.1} parent=1 // pred_check_branch
      %387 = sbr.rel (0) target = $region57
    $region56: #{tpu_custom_call.1} parent=1 // pred_region
      _
    $region57: #{tpu_custom_call.1} parent=1 // pred_fallthru
      _
    // Predicated region
    $region58: #{tpu_custom_call.1} parent=1 // pred_check
      _
    $region59: #{tpu_custom_call.1} parent=1 // pred_check_branch
      %389 = sbr.rel (0) target = $region61
    $region60: #{tpu_custom_call.1} parent=1 // pred_region
      %390 = dma.done [#allocation7], 16
    $region61: #{tpu_custom_call.1} parent=1 // pred_fallthru
      _
    %391 = vsyncpa [#allocation6], 1
    %392 = vsyncpa [#allocation7], 1
    %393 = vsyncpa [#allocation8], 1

</llo_original>
